<compile_context>
chip_gen: v6e
topology: v6e:2x2x1
jax: 0.10.0
libtpu: 0.0.40
codegen_flags: <defaults>
</compile_context>

<pallas_src>
import functools

import jax
import jax.numpy as jnp
from jax import lax
from jax.experimental import pallas as pl
from jax.experimental.pallas import tpu as pltpu

ALPHA = 0.25
GAMMA = 2.0  # gamma == 2.0 -> implemented as an explicit square (no pow/exp-log)


def _focal_loss_kernel(logits_ref, targets_ref, out_ref, *, n_total, tile_n,
                       needs_mask):
    # logits_ref : (tile_n, C) float block
    # targets_ref: (1, 1, tile_n) int32 block (lane-dense)
    # out_ref    : (1, 8, 128) f32 block -> this tile's partial sum, broadcast
    i = pl.program_id(0)

    logits = logits_ref[...].astype(jnp.float32)            # (tile_n, C)
    tn, c = logits.shape

    # Relayout targets lanes -> sublanes once: (1, tile_n) -> (tile_n, 1).
    # sublane-broadcast to (8, tile_n), 2-D transpose, then take lane 0.
    tgt_row = targets_ref[0]                                 # (1, tile_n) int32
    tgt8 = jnp.broadcast_to(tgt_row, (8, tn))                # (8, tile_n)
    tgt_col = jnp.transpose(tgt8, (1, 0))[:, :1]             # (tile_n, 1)

    # Numerically stable log-softmax pieces, fused with the target select.
    m = jnp.max(logits, axis=-1, keepdims=True)              # (tile_n, 1)
    shifted = logits - m                                     # (tile_n, C)
    exp_shifted = jnp.exp(shifted)                           # (tile_n, C)
    sumexp = jnp.sum(exp_shifted, axis=-1, keepdims=True)    # (tile_n, 1)

    col_ids = lax.broadcasted_iota(jnp.int32, (tn, c), 1)
    onehot = col_ids == tgt_col                              # (tile_n, C) bool
    tgt_shifted = jnp.sum(jnp.where(onehot, shifted, 0.0),
                          axis=-1, keepdims=True)            # (tile_n, 1)
    tgt_exp = jnp.sum(jnp.where(onehot, exp_shifted, 0.0),
                      axis=-1, keepdims=True)                # (tile_n, 1)

    ce = jnp.log(sumexp) - tgt_shifted                       # (tile_n, 1)
    # pt = softmax prob of the target class; reuse exp(shifted) instead of
    # exp(-ce) and take the cheap EUP approximate reciprocal.
    pt = tgt_exp * pl.reciprocal(sumexp, approx=True)
    w = 1.0 - pt
    focal = ALPHA * (w * w) * ce                             # (tile_n, 1)

    def _write(vals):
        tile_sum = jnp.sum(vals, keepdims=True)              # (1, 1)
        out_ref[0, :, :] = jnp.broadcast_to(tile_sum, (8, 128))

    if needs_mask:
        last = pl.num_programs(0) - 1

        @pl.when(i == last)
        def _():
            rows = i * tile_n + lax.broadcasted_iota(jnp.int32, (tn, 1), 0)
            _write(jnp.where(rows < n_total, focal, 0.0))

        @pl.when(i != last)
        def _():
            _write(focal)
    else:
        _write(focal)


def focal_loss(logits, targets, *, tile_n=None,
               input_tile_budget_bytes=12 * 1024 * 1024,
               vmem_limit_bytes=32 * 1024 * 1024):
    """logits: (N, C) float (f32 or bf16), targets: (N,) int. Returns scalar f32.

    Implements FocalLoss(alpha=0.25, gamma=2.0, reduction='mean').
    """
    n, c = logits.shape

    if tile_n is None:
        # logits row: C * itemsize bytes; lane-dense targets row: ~32 B of VMEM
        # (8-sublane padding of the (1, tile_n) int32 block).
        bytes_per_row = c * logits.dtype.itemsize + 32
        tile_n = (input_tile_budget_bytes // (2 * bytes_per_row)) // 8 * 8
        tile_n = max(8, tile_n)
    tile_n = max(8, (tile_n // 8) * 8)
    padded_n = ((n + 7) // 8) * 8
    tile_n = min(tile_n, padded_n)

    num_tiles = -(-n // tile_n)
    total = num_tiles * tile_n
    needs_mask = (n % tile_n) != 0

    # Lane-dense targets: (num_tiles, 1, tile_n) int32, zero-padded rows are
    # discarded in-kernel by the remainder mask.
    targets_i32 = targets.astype(jnp.int32).reshape(n)
    targets_tiled = jnp.pad(targets_i32, (0, total - n)).reshape(
        num_tiles, 1, tile_n)

    cost = pl.CostEstimate(
        flops=10 * n * c,
        transcendentals=n * c + 2 * n,
        bytes_accessed=(n * c * logits.dtype.itemsize + n * 4
                        + num_tiles * 8 * 128 * 4),
    )

    kernel = functools.partial(_focal_loss_kernel, n_total=n, tile_n=tile_n,
                               needs_mask=needs_mask)

    # TODO(synk): optionally sweep pipeline_mode=pl.Buffered(3) on the logits
    #             spec once tiles are large; default double-buffering kept here.
    partials = pl.pallas_call(
        kernel,
        out_shape=jax.ShapeDtypeStruct((num_tiles, 8, 128), jnp.float32),
        grid_spec=pltpu.PrefetchScalarGridSpec(
            num_scalar_prefetch=0,
            grid=(num_tiles,),
            in_specs=[
                pl.BlockSpec((tile_n, c), lambda i: (i, 0)),
                pl.BlockSpec((1, 1, tile_n), lambda i: (i, 0, 0)),
            ],
            out_specs=pl.BlockSpec((1, 8, 128), lambda i: (i, 0, 0)),
        ),
        compiler_params=pltpu.CompilerParams(
            dimension_semantics=("parallel",),
            vmem_limit_bytes=vmem_limit_bytes,
        ),
        cost_estimate=cost,
    )(logits, targets_tiled)

    # Tiny final reduce + divide-by-N on the host/XLA side.
    return jnp.sum(partials[:, 0, 0]) * (1.0 / n)


def focal_loss_ref(logits, targets):
    """Pure-JAX reference matching F.cross_entropy + focal weighting (mean)."""
    logp = jax.nn.log_softmax(logits.astype(jnp.float32), axis=-1)
    ce = -jnp.take_along_axis(logp, targets[:, None].astype(jnp.int32),
                              axis=-1)[:, 0]
    pt = jnp.exp(-ce)
    focal = ALPHA * (1.0 - pt) ** GAMMA * ce
    return jnp.mean(focal)


if __name__ == "__main__":
    key = jax.random.PRNGKey(0)
    k1, k2 = jax.random.split(key)

    # Small classification-loss shapes: batch=20 (not a multiple of the tile,
    # to exercise remainder masking), num_classes=32.
    N, C = 20, 32
    logits = jax.random.normal(k1, (N, C), dtype=jnp.float32)
    targets = jax.random.randint(k2, (N,), 0, C, dtype=jnp.int32)

    ref = jax.block_until_ready(focal_loss_ref(logits, targets))

    # Tolerance is slightly loose because pt uses the approximate EUP
    # reciprocal (per-sample relative error ~1e-4, well inside rtol=1e-3).
    # Multi-tile path: grid of 3, last tile partial, "parallel" partial sums.
    out = jax.block_until_ready(focal_loss(logits, targets, tile_n=8))
    assert jnp.allclose(out, ref, rtol=1e-3, atol=1e-5), (out, ref)

    # Auto-sized tile path (single oversized tile with 4 masked rows).
    out2 = jax.block_until_ready(focal_loss(logits, targets))
    assert jnp.allclose(out2, ref, rtol=1e-3, atol=1e-5), (out2, ref)

    print("KERNEL_OK")
</pallas_src>

<mosaic_0001>
module attributes {stable_mosaic.version = 11 : i64} {
  func.func @_focal_loss_kernel(%arg0: i32, %arg1: memref<8x32xf32, #tpu.memory_space<vmem>>, %arg2: memref<1x1x8xi32, #tpu.memory_space<vmem>>, %arg3: memref<1x8x128xf32, #tpu.memory_space<vmem>>) attributes {dimension_semantics = [#tpu.dimension_semantics<parallel>], iteration_bounds = array<i64: 3>, scalar_prefetch = 0 : i64, scratch_operands = 0 : i64, tpu.core_type = #tpu.core_type<tc>, window_params = [{transform_indices = @transform_0, window_bounds = array<i64: 8, 32>}, {transform_indices = @transform_1, window_bounds = array<i64: 1, 1, 8>}, {transform_indices = @transform_2, window_bounds = array<i64: 1, 8, 128>}]} {
    %c0 = arith.constant 0 : index
    %c0_0 = arith.constant 0 : index
    %0 = vector.load %arg1[%c0, %c0_0] : memref<8x32xf32, #tpu.memory_space<vmem>>, vector<8x32xf32>
    %c0_1 = arith.constant 0 : index
    %c0_2 = arith.constant 0 : index
    %c0_3 = arith.constant 0 : index
    %1 = vector.load %arg2[%c0_1, %c0_2, %c0_3] : memref<1x1x8xi32, #tpu.memory_space<vmem>>, vector<1x1x8xi32>
    %2 = vector.shape_cast %1 : vector<1x1x8xi32> to vector<1x8xi32>
    %3 = vector.shape_cast %2 : vector<1x8xi32> to vector<1x8xi32>
    %4 = vector.broadcast %3 : vector<1x8xi32> to vector<8x8xi32>
    %5 = tpu.transpose %4, [1, 0] : vector<8x8xi32> -> vector<8x8xi32>
    %6 = vector.extract_strided_slice %5 {offsets = [0, 0], sizes = [8, 1], strides = [1, 1]} : vector<8x8xi32> to vector<8x1xi32>
    %cst = arith.constant dense<0xFF800000> : vector<8xf32>
    %7 = vector.multi_reduction <maximumf>, %0, %cst [1] : vector<8x32xf32> to vector<8xf32>
    %8 = vector.shape_cast %7 : vector<8xf32> to vector<8x1xf32>
    %9 = vector.broadcast %8 : vector<8x1xf32> to vector<8x32xf32>
    %10 = arith.subf %0, %9 : vector<8x32xf32>
    %11 = math.exp %10 : vector<8x32xf32>
    %cst_4 = arith.constant dense<0.000000e+00> : vector<8xf32>
    %12 = vector.multi_reduction <add>, %11, %cst_4 [1] : vector<8x32xf32> to vector<8xf32>
    %13 = vector.shape_cast %12 : vector<8xf32> to vector<8x1xf32>
    %14 = tpu.iota {dimensions = array<i32: 1>} : vector<8x32xi32>
    %15 = vector.broadcast %6 : vector<8x1xi32> to vector<8x32xi32>
    %16 = arith.cmpi eq, %14, %15 : vector<8x32xi32>
    %cst_5 = arith.constant 0.000000e+00 : f32
    %17 = vector.broadcast %cst_5 : f32 to vector<8x32xf32>
    %18 = arith.select %16, %10, %17 : vector<8x32xi1>, vector<8x32xf32>
    %cst_6 = arith.constant dense<0.000000e+00> : vector<8xf32>
    %19 = vector.multi_reduction <add>, %18, %cst_6 [1] : vector<8x32xf32> to vector<8xf32>
    %20 = vector.shape_cast %19 : vector<8xf32> to vector<8x1xf32>
    %cst_7 = arith.constant 0.000000e+00 : f32
    %21 = vector.broadcast %cst_7 : f32 to vector<8x32xf32>
    %22 = arith.select %16, %11, %21 : vector<8x32xi1>, vector<8x32xf32>
    %cst_8 = arith.constant dense<0.000000e+00> : vector<8xf32>
    %23 = vector.multi_reduction <add>, %22, %cst_8 [1] : vector<8x32xf32> to vector<8xf32>
    %24 = vector.shape_cast %23 : vector<8xf32> to vector<8x1xf32>
    %25 = math.log %13 : vector<8x1xf32>
    %26 = arith.subf %25, %20 : vector<8x1xf32>
    %27 = tpu.reciprocal %13 {approx = true} : vector<8x1xf32> -> vector<8x1xf32>
    %28 = arith.mulf %24, %27 : vector<8x1xf32>
    %cst_9 = arith.constant 1.000000e+00 : f32
    %29 = vector.broadcast %cst_9 : f32 to vector<8x1xf32>
    %30 = arith.subf %29, %28 : vector<8x1xf32>
    %31 = arith.mulf %30, %30 : vector<8x1xf32>
    %cst_10 = arith.constant 2.500000e-01 : f32
    %32 = vector.broadcast %cst_10 : f32 to vector<8x1xf32>
    %33 = arith.mulf %32, %31 : vector<8x1xf32>
    %34 = arith.mulf %33, %26 : vector<8x1xf32>
    %c2_i32 = arith.constant 2 : i32
    %35 = arith.cmpi eq, %arg0, %c2_i32 : i32
    %36 = arith.extui %35 : i1 to i32
    %c0_i32 = arith.constant 0 : i32
    %37 = arith.cmpi ne, %36, %c0_i32 : i32
    scf.if %37 {
      %c8_i32 = arith.constant 8 : i32
      %41 = arith.muli %arg0, %c8_i32 : i32
      %42 = tpu.iota {dimensions = array<i32: 0>} : vector<8x1xi32>
      %43 = vector.broadcast %41 : i32 to vector<8x1xi32>
      %44 = arith.addi %43, %42 : vector<8x1xi32>
      %c20_i32 = arith.constant 20 : i32
      %45 = vector.broadcast %c20_i32 : i32 to vector<8x1xi32>
      %46 = arith.cmpi slt, %44, %45 : vector<8x1xi32>
      %cst_13 = arith.constant 0.000000e+00 : f32
      %47 = vector.broadcast %cst_13 : f32 to vector<8x1xf32>
      %48 = arith.select %46, %34, %47 : vector<8x1xi1>, vector<8x1xf32>
      %49 = vector.shape_cast %48 : vector<8x1xf32> to vector<1x8x1xf32>
      %cst_14 = arith.constant dense<0.000000e+00> : vector<1xf32>
      %50 = vector.multi_reduction <add>, %49, %cst_14 [1, 2] : vector<1x8x1xf32> to vector<1xf32>
      %51 = vector.shape_cast %50 : vector<1xf32> to vector<1x1x1xf32>
      %52 = vector.extract %51[0, 0, 0] : f32 from vector<1x1x1xf32>
      %53 = vector.broadcast %52 : f32 to vector<1x1xf32>
      %54 = vector.shape_cast %53 : vector<1x1xf32> to vector<1x1xf32>
      %55 = vector.broadcast %54 : vector<1x1xf32> to vector<8x128xf32>
      %c0_15 = arith.constant 0 : index
      %c0_16 = arith.constant 0 : index
      %c0_17 = arith.constant 0 : index
      %56 = vector.load %arg3[%c0_15, %c0_16, %c0_17] : memref<1x8x128xf32, #tpu.memory_space<vmem>>, vector<1x8x128xf32>
      %57 = vector.shape_cast %56 : vector<1x8x128xf32> to vector<8x128xf32>
      %58 = vector.shape_cast %55 : vector<8x128xf32> to vector<1x8x128xf32>
      tpu.vector_store %arg3[%c0_15, %c0_16, %c0_17], %58 {strides = array<i32>} : memref<1x8x128xf32, #tpu.memory_space<vmem>>, vector<1x8x128xf32>,
    } else {
    }
    %c2_i32_11 = arith.constant 2 : i32
    %38 = arith.cmpi ne, %arg0, %c2_i32_11 : i32
    %39 = arith.extui %38 : i1 to i32
    %c0_i32_12 = arith.constant 0 : i32
    %40 = arith.cmpi ne, %39, %c0_i32_12 : i32
    scf.if %40 {
      %41 = vector.shape_cast %34 : vector<8x1xf32> to vector<1x8x1xf32>
      %cst_13 = arith.constant dense<0.000000e+00> : vector<1xf32>
      %42 = vector.multi_reduction <add>, %41, %cst_13 [1, 2] : vector<1x8x1xf32> to vector<1xf32>
      %43 = vector.shape_cast %42 : vector<1xf32> to vector<1x1x1xf32>
      %44 = vector.extract %43[0, 0, 0] : f32 from vector<1x1x1xf32>
      %45 = vector.broadcast %44 : f32 to vector<1x1xf32>
      %46 = vector.shape_cast %45 : vector<1x1xf32> to vector<1x1xf32>
      %47 = vector.broadcast %46 : vector<1x1xf32> to vector<8x128xf32>
      %c0_14 = arith.constant 0 : index
      %c0_15 = arith.constant 0 : index
      %c0_16 = arith.constant 0 : index
      %48 = vector.load %arg3[%c0_14, %c0_15, %c0_16] : memref<1x8x128xf32, #tpu.memory_space<vmem>>, vector<1x8x128xf32>
      %49 = vector.shape_cast %48 : vector<1x8x128xf32> to vector<8x128xf32>
      %50 = vector.shape_cast %47 : vector<8x128xf32> to vector<1x8x128xf32>
      tpu.vector_store %arg3[%c0_14, %c0_15, %c0_16], %50 {strides = array<i32>} : memref<1x8x128xf32, #tpu.memory_space<vmem>>, vector<1x8x128xf32>,
    } else {
    }
    return
  }
  func.func @transform_0(%arg0: i32) -> (i32, i32) {
    %c0_i32 = arith.constant 0 : i32
    %c0_i32_0 = arith.constant 0 : i32
    return %arg0, %c0_i32 : i32, i32
  }
  func.func @transform_1(%arg0: i32) -> (i32, i32, i32) {
    %c0_i32 = arith.constant 0 : i32
    %c0_i32_0 = arith.constant 0 : i32
    %c0_i32_1 = arith.constant 0 : i32
    return %arg0, %c0_i32, %c0_i32_0 : i32, i32, i32
  }
  func.func @transform_2(%arg0: i32) -> (i32, i32, i32) {
    %c0_i32 = arith.constant 0 : i32
    %c0_i32_0 = arith.constant 0 : i32
    %c0_i32_1 = arith.constant 0 : i32
    return %arg0, %c0_i32, %c0_i32_0 : i32, i32, i32
  }
}

</mosaic_0001>

<llo_original>
// kernel: tpu_custom_call.1
$region0: #{tpu_custom_call.1}
  #allocation0 [shape = 'u32[]', space=smem, size = 0x4, offset = 0x4, fixed_abs, tag = 'smem constant byte address 0x4 - core index']
  #allocation1 [shape = 'u32[144,128]{1,0:T(1,128)}', space=vmem, size = 0x12000, scoped, tag = 'internal scratch']
  %s0 = inlined_call_operand.hbm [shape: f32[20,32], index: 0, kind: input, shape index: {}]
  %s1 = inlined_call_operand.hbm [shape: s32[3,1,8], index: 1, kind: input, shape index: {}]
  %s2 = inlined_call_operand.hbm [shape: f32[3,8,128], index: 2, kind: output, shape index: {}]
  %s3 = sld [smem:[#allocation0]]
  $region57: #{tpu_custom_call.1} parent=0
    _
  %s5 = ssub.s32 1, %s3
  %s6 = scalar_select 0, %s5, %s3
  $region1: #{tpu_custom_call.1} parent=0
    #allocation2 [shape = 'u8[8192]{0}', space=vmem, size = 0x2000, scoped, tag = 'input window, operand 0']
    #allocation3 [shape = 's32[2]{0}', space=sflag, size = 0x8, scoped, tag = 'scoped memory for tpu_custom_call.1']
    #allocation4 [shape = 's32[2]{0}', space=sflag, size = 0x8, scoped, tag = 'scoped memory for tpu_custom_call.1']
    #allocation5 [shape = 'u8[1024]{0}', space=vmem, size = 0x400, scoped, tag = 'input window, operand 1']
    #allocation6 [shape = 's32[2]{0}', space=sflag, size = 0x8, scoped, tag = 'scoped memory for tpu_custom_call.1']
    #allocation7 [shape = 'u8[8192]{0}', space=vmem, size = 0x2000, scoped, tag = 'output window, operand 0']
    %7 = vsyncpa [#allocation3], 0
    %s8 = scalar_lea.sflag [#allocation3], 1
    %9 = vsyncpa %s8, 0
    %10 = vsyncpa [#allocation6], 0
    %s11 = scalar_lea.sflag [#allocation6], 1
    %12 = vsyncpa %s11, 0
    %13 = vsyncpa [#allocation4], 0
    %s14 = scalar_lea.sflag [#allocation4], 1
    %15 = vsyncpa %s14, 0
    loop: start=0, step=1, limit=5
    $region2: #{tpu_custom_call.1} parent=1 // loop_pre_header
      _
    $region3: #{tpu_custom_call.1} parent=1 // loop_header
      %s17 = sphi 0, %s21
      %p18 = scmp.ge.s32.totalorder %s17, 5
      %s27 = sphi 0, %s29
      %s30 = sphi 0, %s27
      %s31 = sphi 0, %s30
      %s47 = sphi 0, %s31
      %s53 = sphi 0, %s55
      %s56 = sphi 0, %s53
      %s57 = sphi 0, %s56
      %s73 = sphi 0, %s57
      %s79 = sphi 0, %s81
      %s82 = sphi 0, %s79
      %s83 = sphi 0, %s82
      %s99 = sphi 0, %s83
    $region4: #{tpu_custom_call.1} parent=1 // loop_header_branch
      %20 = sbr.rel (%p18) target = $region8
    $region5: #{tpu_custom_call.1} parent=1 // loop_body
      %s22 = ssub.s32 %s17, 1
      %s23 = ssub.s32 %s17, 2
      %s24 = sadd.s32 %s17, 1
      %s25 = ssub.s32 %s17, %s24
      %p26 = scmp.eq.s32.totalorder %s25, 0
      %s28 = sadd.s32 %s27, 1
      %s29 = scalar_select %p26, %s27, %s28
      %p32 = pneg %p26
      %p33 = scmp.eq.s32.totalorder %s17, 2
      %p34 = por %p32, %p33
      %p35 = scmp.ne.s32.totalorder %s27, %s30
      %p36 = scmp.eq.s32.totalorder %s17, 0
      %p37 = por %p35, %p36
      %p38 = scmp.ne.s32.totalorder %s27, %s30
      %p39 = scmp.eq.s32.totalorder %s22, 2
      %p40 = por %p38, %p39
      %p41 = scmp.ne.s32.totalorder %s30, %s31
      %p42 = scmp.eq.s32.totalorder %s22, 0
      %p43 = por %p41, %p42
      %p44 = scmp.ne.s32.totalorder %s30, %s31
      %p45 = scmp.eq.s32.totalorder %s23, 2
      %p46 = por %p44, %p45
      %p48 = scmp.ne.s32.totalorder %s31, %s47
      %p49 = scmp.eq.s32.totalorder %s23, 0
      %p50 = por %p48, %p49
      %s51 = ssub.s32 %s17, %s24
      %p52 = scmp.eq.s32.totalorder %s51, 0
      %s54 = sadd.s32 %s53, 1
      %s55 = scalar_select %p52, %s53, %s54
      %p58 = pneg %p52
      %p59 = scmp.eq.s32.totalorder %s17, 2
      %p60 = por %p58, %p59
      %p61 = scmp.ne.s32.totalorder %s53, %s56
      %p62 = scmp.eq.s32.totalorder %s17, 0
      %p63 = por %p61, %p62
      %p64 = scmp.ne.s32.totalorder %s53, %s56
      %p65 = scmp.eq.s32.totalorder %s22, 2
      %p66 = por %p64, %p65
      %p67 = scmp.ne.s32.totalorder %s56, %s57
      %p68 = scmp.eq.s32.totalorder %s22, 0
      %p69 = por %p67, %p68
      %p70 = scmp.ne.s32.totalorder %s56, %s57
      %p71 = scmp.eq.s32.totalorder %s23, 2
      %p72 = por %p70, %p71
      %p74 = scmp.ne.s32.totalorder %s57, %s73
      %p75 = scmp.eq.s32.totalorder %s23, 0
      %p76 = por %p74, %p75
      %s77 = ssub.s32 %s17, %s24
      %p78 = scmp.eq.s32.totalorder %s77, 0
      %s80 = sadd.s32 %s79, 1
      %s81 = scalar_select %p78, %s79, %s80
      %p84 = pneg %p78
      %p85 = scmp.eq.s32.totalorder %s17, 2
      %p86 = por %p84, %p85
      %p87 = scmp.ne.s32.totalorder %s79, %s82
      %p88 = scmp.eq.s32.totalorder %s17, 0
      %p89 = por %p87, %p88
      %p90 = scmp.ne.s32.totalorder %s79, %s82
      %p91 = scmp.eq.s32.totalorder %s22, 2
      %p92 = por %p90, %p91
      %p93 = scmp.ne.s32.totalorder %s82, %s83
      %p94 = scmp.eq.s32.totalorder %s22, 0
      %p95 = por %p93, %p94
      %p96 = scmp.ne.s32.totalorder %s82, %s83
      %p97 = scmp.eq.s32.totalorder %s23, 2
      %p98 = por %p96, %p97
      %p100 = scmp.ne.s32.totalorder %s83, %s99
      %p101 = scmp.eq.s32.totalorder %s23, 0
      %p102 = por %p100, %p101
      %p103 = scmp.le.s32.totalorder 1, %s17
      %p104 = scmp.lt.s32.totalorder %s17, 4
      %p105 = pnand %p103, %p104
      %p106 = pneg %p105
      // Predicated region
      $region9: #{tpu_custom_call.1} parent=5 // pred_check
        _
      $region10: #{tpu_custom_call.1} parent=5 // pred_check_branch
        %108 = sbr.rel (%p105) target = $region12
      $region11: #{tpu_custom_call.1} parent=5 // pred_region
        %s109 = ssub.s32 %s17, 1
      $region12: #{tpu_custom_call.1} parent=5 // pred_fallthru
        _
      %p110 = scmp.lt.s32.totalorder %s17, 3
      // Predicated region
      $region13: #{tpu_custom_call.1} parent=5 // pred_check
        %p111 = pneg %p110
      $region14: #{tpu_custom_call.1} parent=5 // pred_check_branch
        %113 = sbr.rel (%p111) target = $region16
      $region15: #{tpu_custom_call.1} parent=5 // pred_region
        // Predicated region
        $region17: #{tpu_custom_call.1} parent=15 // pred_check
          %p114 = pneg %p37
        $region18: #{tpu_custom_call.1} parent=15 // pred_check_branch
          %116 = sbr.rel (%p114) target = $region20
        $region19: #{tpu_custom_call.1} parent=15 // pred_region
          %s117 = sand.u32 %s27, 1
          %s118 = scalar_lea.sflag [#allocation3], %s117
          %s119 = sand.u32 %s27, 1
          %s120 = smul.addr %s119, 8
          %s121 = scalar_lea.vmem [#allocation2], %s120
          %s123 = ssub.s32 128, 128
          %124 = vsyncadd %s118, %s123
          %s125 = smul.addr %s17, 128
          %s126 = scalar_lea.hbm %s0, %s125
          %s128 = sshll.u32 %s121, 4
          %s129 = int_to_ptr.vmem [resolvable:$true] %s128
          %131 = dma.hbm_to_vmem [thread:$0]  %s126, 128, %s129, %s118
        $region20: #{tpu_custom_call.1} parent=15 // pred_fallthru
          _
        // Predicated region
        $region21: #{tpu_custom_call.1} parent=15 // pred_check
          %p132 = pneg %p63
        $region22: #{tpu_custom_call.1} parent=15 // pred_check_branch
          %134 = sbr.rel (%p132) target = $region24
        $region23: #{tpu_custom_call.1} parent=15 // pred_region
          %s135 = sand.u32 %s53, 1
          %s136 = scalar_lea.sflag [#allocation6], %s135
          %s137 = sand.u32 %s53, 1
          %s138 = scalar_lea.vmem [#allocation5], %s137
          %s140 = ssub.s32 16, 16
          %141 = vsyncadd %s136, %s140
          %s142 = smul.addr %s17, 16
          %s143 = scalar_lea.hbm %s1, %s142
          %s145 = sshll.u32 %s138, 4
          %s146 = int_to_ptr.vmem [resolvable:$true] %s145
          %148 = dma.hbm_to_vmem [thread:$0]  %s143, 16, %s146, %s136
        $region24: #{tpu_custom_call.1} parent=15 // pred_fallthru
          _
      $region16: #{tpu_custom_call.1} parent=5 // pred_fallthru
        _
      %p149 = scmp.le.s32.totalorder 1, %s17
      %p150 = scmp.lt.s32.totalorder %s17, 4
      %p151 = pnand %p149, %p150
      %p152 = pneg %p151
      // Predicated region
      $region25: #{tpu_custom_call.1} parent=5 // pred_check
        _
      $region26: #{tpu_custom_call.1} parent=5 // pred_check_branch
        %154 = sbr.rel (%p151) target = $region28
      $region27: #{tpu_custom_call.1} parent=5 // pred_region
        %s155 = ssub.s32 %s17, 1
        %s156 = sand.u32 %s30, 1
        %s157 = scalar_lea.sflag [#allocation3], %s156
        %s158 = sand.u32 %s30, 1
        %s159 = smul.addr %s158, 8
        %s160 = scalar_lea.vmem [#allocation2], %s159
        // Predicated region
        $region29: #{tpu_custom_call.1} parent=27 // pred_check
          %p161 = pneg %p43
        $region30: #{tpu_custom_call.1} parent=27 // pred_check_branch
          %163 = sbr.rel (%p161) target = $region32
        $region31: #{tpu_custom_call.1} parent=27 // pred_region
          %164 = dma.done %s157, 128
        $region32: #{tpu_custom_call.1} parent=27 // pred_fallthru
          _
        %s165 = sand.u32 %s56, 1
        %s166 = scalar_lea.sflag [#allocation6], %s165
        %s167 = sand.u32 %s56, 1
        %s168 = scalar_lea.vmem [#allocation5], %s167
        // Predicated region
        $region33: #{tpu_custom_call.1} parent=27 // pred_check
          %p169 = pneg %p69
        $region34: #{tpu_custom_call.1} parent=27 // pred_check_branch
          %171 = sbr.rel (%p169) target = $region36
        $region35: #{tpu_custom_call.1} parent=27 // pred_region
          %172 = dma.done %s166, 16
        $region36: #{tpu_custom_call.1} parent=27 // pred_fallthru
          _
        %s173 = sand.u32 %s30, 1
        %s174 = scalar_lea.sflag [#allocation3], %s173
        %s175 = sand.u32 %s30, 1
        %s176 = smul.addr %s175, 8
        %s177 = scalar_lea.vmem [#allocation2], %s176
        %p178 = pneg %p43
        %p179 = pneg %p40
        %s180 = sand.u32 %s56, 1
        %s181 = scalar_lea.sflag [#allocation6], %s180
        %s182 = sand.u32 %s56, 1
        %s183 = scalar_lea.vmem [#allocation5], %s182
        %p184 = pneg %p69
        %p185 = pneg %p66
        %p186 = pneg %p95
        %p187 = pneg %p92
        %s188 = sand.u32 %s82, 1
        %s189 = scalar_lea.sflag [#allocation4], %s188
        %s190 = sand.u32 %s82, 1
        %s191 = smul.addr %s190, 8
        %s192 = scalar_lea.vmem [#allocation7], %s191
        %v193 = vld [vmem:[%s160] sm:$0xff]
        %v194 = vld [vmem:[%s168] sm:$0x1]
        %v195 = vlaneseq
        %v196 = vshrl.u32 %v195, 7
        %v197 = vsub.s32 0, %v196
        %v198 = vrot.slane %v194, %v197
        %199 = vxpose.xlu0.b32.start [1/16] %v198, 128
        %200 = vxpose.xlu0.b32.cont [2/16] 0, 128
        %201 = vxpose.xlu0.b32.cont [3/16] 0, 128
        %202 = vxpose.xlu0.b32.cont [4/16] 0, 128
        %203 = vxpose.xlu0.b32.cont [5/16] 0, 128
        %204 = vxpose.xlu0.b32.cont [6/16] 0, 128
        %205 = vxpose.xlu0.b32.cont [7/16] 0, 128
        %206 = vxpose.xlu0.b32.cont [8/16] 0, 128
        %207 = vxpose.xlu0.b32.cont [9/16] 0, 128
        %208 = vxpose.xlu0.b32.cont [10/16] 0, 128
        %209 = vxpose.xlu0.b32.cont [11/16] 0, 128
        %210 = vxpose.xlu0.b32.cont [12/16] 0, 128
        %211 = vxpose.xlu0.b32.cont [13/16] 0, 128
        %212 = vxpose.xlu0.b32.cont [14/16] 0, 128
        %213 = vxpose.xlu0.b32.cont [15/16] 0, 128
        %214 = vxpose.xlu0.b32.end [16/16] 0, 128
        %v215 = vpop.trf.xlu0
        %v216 = vpop.trf.xlu0
        %v217 = vpop.trf.xlu0
        %v218 = vpop.trf.xlu0
        %v219 = vpop.trf.xlu0
        %v220 = vpop.trf.xlu0
        %v221 = vpop.trf.xlu0
        %v222 = vpop.trf.xlu0
        %v223 = vpop.trf.xlu0
        %v224 = vpop.trf.xlu0
        %v225 = vpop.trf.xlu0
        %v226 = vpop.trf.xlu0
        %v227 = vpop.trf.xlu0
        %v228 = vpop.trf.xlu0
        %v229 = vpop.trf.xlu0
        %v230 = vpop.trf.xlu0
        %vm231 = vcmask 261120
        %v232 = vsel %vm231, %v193, -inf
        %233 = vmax.xlane.f32.xlu0 %v232
        %v234 = vpop.xlane.xlu0 %233
        %v235 = vsub.f32 %v193, %v234
        %v236 = vmul.f32 %v235, 1.442695
        %v237 = vpow.pop %v236
        %v238 = vsel %vm231, %v237, 0.0
        %239 = vadd.xlane.f32.xlu0 %v238
        %v240 = vpop.xlane.xlu0 %239
        %v241 = vlaneseq
        %v242 = vand.u32 %v241, 127
        %243 = vset.pattern.permute.xlu0 0
        %244 = vperm.xlu0 %243, %v215
        %v245 = vpop.permute.xlu0 %244
        %vm246 = vcmp.eq.s32.totalorder %v242, %v245
        %v247 = vsel %vm246, %v235, 0.0
        %v248 = vsel %vm231, %v247, 0.0
        %249 = vadd.xlane.f32.xlu0 %v248
        %v250 = vpop.xlane.xlu0 %249
        %v251 = vsel %vm246, %v237, 0.0
        %v252 = vsel %vm231, %v251, 0.0
        %253 = vadd.xlane.f32.xlu0 %v252
        %v254 = vpop.xlane.xlu0 %253
        %v255 = vlog2.pop %v240
        %v256 = vmul.f32 %v255, 0.6931472
        %v257 = vsub.f32 %v256, %v250
        %v258 = vrcp.pop %v240
        %v259 = vmul.f32 %v254, %v258
        %v260 = vsub.f32 1.0, %v259
        %v261 = vmul.f32 %v260, %v260
        %v262 = vmul.f32 %v261, 0.25
        %v263 = vmul.f32 %v262, %v257
        %p264 = scmp.eq.s32.totalorder %s22, 2
        // Predicated region
        $region37: #{tpu_custom_call.1} parent=27 // pred_check
          %p265 = pneg %p264
        $region38: #{tpu_custom_call.1} parent=27 // pred_check_branch
          %267 = sbr.rel (%p265) target = $region40
        $region39: #{tpu_custom_call.1} parent=27 // pred_region
          %s268 = smul.u32 %s22, 8
          %v269 = vlaneseq
          %v270 = vshrl.u32 %v269, 7
          %v271 = vstv %s268
          %v272 = vadd.s32 %v271, %v270
          %vm273 = vcmp.lt.s32.totalorder %v272, 20
          %v274 = vsel %vm273, %v263, 0.0
          %vm275 = vcmask 7168
          %v276 = vsel %vm275, %v274, 0.0
          %277 = vadd.xlane.f32.xlu0 %v276
          %v278 = vpop.xlane.xlu0 %277
          %v279 = vrot.slane %v278, 4
          %v280 = vadd.f32 %v278, %v279
          %v281 = vrot.slane %v280, 2
          %v282 = vadd.f32 %v280, %v281
          %v283 = vrot.slane %v282, 1
          %v284 = vadd.f32 %v282, %v283
          %s285 = vtos %v284
          %v286 = vstv %s285
          %287 = vst [vmem:[%s192] sm:$0xff] %v286
        $region40: #{tpu_custom_call.1} parent=27 // pred_fallthru
          _
        %p288 = scmp.ne.s32.totalorder %s22, 2
        // Predicated region
        $region41: #{tpu_custom_call.1} parent=27 // pred_check
          %p289 = pneg %p288
        $region42: #{tpu_custom_call.1} parent=27 // pred_check_branch
          %291 = sbr.rel (%p289) target = $region44
        $region43: #{tpu_custom_call.1} parent=27 // pred_region
          %vm292 = vcmask 7168
          %v293 = vsel %vm292, %v263, 0.0
          %294 = vadd.xlane.f32.xlu0 %v293
          %v295 = vpop.xlane.xlu0 %294
          %v296 = vrot.slane %v295, 4
          %v297 = vadd.f32 %v295, %v296
          %v298 = vrot.slane %v297, 2
          %v299 = vadd.f32 %v297, %v298
          %v300 = vrot.slane %v299, 1
          %v301 = vadd.f32 %v299, %v300
          %s302 = vtos %v301
          %v303 = vstv %s302
          %304 = vst [vmem:[%s192] sm:$0xff] %v303
        $region44: #{tpu_custom_call.1} parent=27 // pred_fallthru
          _
        %s305 = sand.u32 %s82, 1
        %s306 = scalar_lea.sflag [#allocation4], %s305
        %s307 = sand.u32 %s82, 1
        %s308 = smul.addr %s307, 8
        %s309 = scalar_lea.vmem [#allocation7], %s308
        // Predicated region
        $region45: #{tpu_custom_call.1} parent=27 // pred_check
          %p310 = pneg %p92
        $region46: #{tpu_custom_call.1} parent=27 // pred_check_branch
          %312 = sbr.rel (%p310) target = $region48
        $region47: #{tpu_custom_call.1} parent=27 // pred_region
          %s314 = ssub.s32 128, 128
          %315 = vsyncadd %s306, %s314
          %s316 = smul.addr %s22, 128
          %s317 = scalar_lea.hbm %s2, %s316
          %s319 = sshll.u32 %s309, 4
          %s320 = int_to_ptr.vmem [resolvable:$true] %s319
          %322 = dma.vmem_to_hbm [thread:$0]  %s320, 128, %s317, %s306
        $region48: #{tpu_custom_call.1} parent=27 // pred_fallthru
          _
      $region28: #{tpu_custom_call.1} parent=5 // pred_fallthru
        _
      %p323 = scmp.le.s32.totalorder 2, %s17
      // Predicated region
      $region49: #{tpu_custom_call.1} parent=5 // pred_check
        %p324 = pneg %p323
      $region50: #{tpu_custom_call.1} parent=5 // pred_check_branch
        %326 = sbr.rel (%p324) target = $region52
      $region51: #{tpu_custom_call.1} parent=5 // pred_region
        %s327 = ssub.s32 %s17, 2
        // Predicated region
        $region53: #{tpu_custom_call.1} parent=51 // pred_check
          %p328 = pneg %p98
        $region54: #{tpu_custom_call.1} parent=51 // pred_check_branch
          %330 = sbr.rel (%p328) target = $region56
        $region55: #{tpu_custom_call.1} parent=51 // pred_region
          %s331 = sand.u32 %s83, 1
          %s332 = scalar_lea.sflag [#allocation4], %s331
          %s333 = sand.u32 %s83, 1
          %s334 = smul.addr %s333, 8
          %s335 = scalar_lea.vmem [#allocation7], %s334
          %336 = dma.done %s332, 128
        $region56: #{tpu_custom_call.1} parent=51 // pred_fallthru
          _
      $region52: #{tpu_custom_call.1} parent=5 // pred_fallthru
        _
    $region6: #{tpu_custom_call.1} parent=1 // loop_footer
      %s21 = sadd.s32 1, %s17
    $region7: #{tpu_custom_call.1} parent=1 // loop_footer_branch
      %16 = sbr.rel target = $region3
    $region8: #{tpu_custom_call.1} parent=1 // loop_exit
      _
    %337 = vsyncpa [#allocation3], 1
    %s338 = scalar_lea.sflag [#allocation3], 1
    %339 = vsyncpa %s338, 1
    %340 = vsyncpa [#allocation6], 1
    %s341 = scalar_lea.sflag [#allocation6], 1
    %342 = vsyncpa %s341, 1
    %343 = vsyncpa [#allocation4], 1
    %s344 = scalar_lea.sflag [#allocation4], 1
    %345 = vsyncpa %s344, 1

</llo_original>
